<compile_context>
chip_gen: v5e
topology: v5e:2x2
jax: 0.10.0
libtpu: 0.0.40
codegen_flags: <defaults>
</compile_context>

<pallas_src>
import jax
import jax.numpy as jnp
from jax.experimental import pallas as pl
from jax.experimental.pallas import tpu as pltpu


def siamese_kernel(x1_ref, x2_ref, w1_ref, b1_ref, w2_ref, b2_ref,
                   w3_ref, b3_ref, o_ref):
    tb = x1_ref.shape[0]

    # Fuse the two towers: stack along the sublane (batch) axis and run the
    # shared fc1/ReLU/fc2/ReLU once on the (2*TB, D_in) block.
    x = jnp.concatenate([x1_ref[...], x2_ref[...]], axis=0)

    h = jnp.dot(x, w1_ref[...], preferred_element_type=jnp.float32) + b1_ref[...]
    h = jnp.maximum(h, 0.0)
    h = jnp.dot(h, w2_ref[...], preferred_element_type=jnp.float32) + b2_ref[...]
    h = jnp.maximum(h, 0.0)

    # Split back into the two branches and take |out1 - out2|.
    d = jnp.abs(h[:tb, :] - h[tb:, :])                       # (TB, H)

    # fc3 as VPU multiply + lane reduction (w3 stored as (1, H)); b3 is a
    # scalar living in SMEM.  Avoids a wasted N=1 MXU round-trip.
    o_ref[...] = (jnp.sum(d * w3_ref[...], axis=-1, keepdims=True)
                  + b3_ref[0, 0])


def siamese_forward(x1, x2, params, *, tb=None):
    w1, b1, w2, b2, w3, b3 = params
    B, D_in = x1.shape
    H = w1.shape[1]

    if tb is None:
        tb = B if B <= 128 else 128      # sized well inside 64 MiB (v7x) VMEM
    assert B % tb == 0, "batch must be a multiple of the batch tile"
    grid = (B // tb,)

    # Weights / biases: full-array blocks, constant index_map -> stay resident
    # in VMEM across all grid iterations.
    def resident(a):
        return pl.BlockSpec(a.shape, lambda i: (0,) * a.ndim)

    return pl.pallas_call(
        siamese_kernel,
        out_shape=jax.ShapeDtypeStruct((B, 1), jnp.float32),
        grid_spec=pltpu.PrefetchScalarGridSpec(
            num_scalar_prefetch=0,
            grid=grid,
            in_specs=[
                pl.BlockSpec((tb, D_in), lambda i: (i, 0)),   # x1 tile
                pl.BlockSpec((tb, D_in), lambda i: (i, 0)),   # x2 tile
                resident(w1), resident(b1),
                resident(w2), resident(b2),
                resident(w3),
                # (1,1) scalar bias via SMEM: no padded VMEM tile / DMA.
                pl.BlockSpec(memory_space=pltpu.MemorySpace.SMEM),
            ],
            out_specs=pl.BlockSpec((tb, 1), lambda i: (i, 0)),
        ),
        compiler_params=pltpu.CompilerParams(
            # batch tiles are independent -> megacore-shardable on v7x
            dimension_semantics=("parallel",),
        ),
        # TODO(synk): output block last-dim is 1 (lane-sparse store); at large
        # B a lane-dense output slab + wrapper reshape would be faster.
    )(x1, x2, w1, b1, w2, b2, w3, b3)


def init_params(key, input_size, hidden_size):
    """Deterministic init mirroring nn.Linear shapes (stored transposed)."""
    k1, k2, k3, k4, k5, k6 = jax.random.split(key, 6)

    # PyTorch nn.Linear(in, out): weight (out, in), bias (out,).
    # We store W as (in, out) and b as (1, out) for x @ W + b; w3 as (1, H).
    def lin(kw, kb, fan_in, fan_out):
        bound = 1.0 / jnp.sqrt(fan_in)
        w = jax.random.uniform(kw, (fan_in, fan_out), jnp.float32, -bound, bound)
        b = jax.random.uniform(kb, (1, fan_out), jnp.float32, -bound, bound)
        return w, b

    w1, b1 = lin(k1, k2, input_size, hidden_size)
    w2, b2 = lin(k3, k4, hidden_size, hidden_size)
    w3_col, b3 = lin(k5, k6, hidden_size, 1)
    w3 = w3_col.T                                   # (1, hidden) for VPU fc3
    return (w1, b1, w2, b2, w3, b3)                 # b3 is (1, 1)


def reference_forward(x1, x2, params):
    w1, b1, w2, b2, w3, b3 = params

    def tower(x):
        h = jnp.maximum(x @ w1 + b1, 0.0)
        h = jnp.maximum(h @ w2 + b2, 0.0)
        return h

    d = jnp.abs(tower(x1) - tower(x2))
    return jnp.sum(d * w3, axis=-1, keepdims=True) + b3


if __name__ == "__main__":
    input_size = 16
    hidden_size = 32
    batch = 16          # tiled as two (8, D) grid steps -> exercises pipeline

    key = jax.random.PRNGKey(0)
    kx1, kx2, kp = jax.random.split(key, 3)
    x1 = jax.random.normal(kx1, (batch, input_size), jnp.float32)
    x2 = jax.random.normal(kx2, (batch, input_size), jnp.float32)
    params = init_params(kp, input_size, hidden_size)

    out = siamese_forward(x1, x2, params, tb=8)
    out = jax.block_until_ready(out)

    ref = reference_forward(x1, x2, params)
    assert out.shape == (batch, 1)
    assert jnp.allclose(out, ref, atol=1e-5, rtol=1e-5)

    print("KERNEL_OK")
</pallas_src>

<mosaic_0001>
module attributes {stable_mosaic.version = 11 : i64} {
  func.func @siamese_kernel(%arg0: i32, %arg1: memref<8x16xf32, #tpu.memory_space<vmem>>, %arg2: memref<8x16xf32, #tpu.memory_space<vmem>>, %arg3: memref<16x32xf32, #tpu.memory_space<vmem>>, %arg4: memref<1x32xf32, #tpu.memory_space<vmem>>, %arg5: memref<32x32xf32, #tpu.memory_space<vmem>>, %arg6: memref<1x32xf32, #tpu.memory_space<vmem>>, %arg7: memref<1x32xf32, #tpu.memory_space<vmem>>, %arg8: memref<1x1xf32, #tpu.memory_space<smem>>, %arg9: memref<8x1xf32, #tpu.memory_space<vmem>>) attributes {dimension_semantics = [#tpu.dimension_semantics<parallel>], iteration_bounds = array<i64: 2>, scalar_prefetch = 0 : i64, scratch_operands = 0 : i64, tpu.core_type = #tpu.core_type<tc>, window_params = [{transform_indices = @transform_0, window_bounds = array<i64: 8, 16>}, {transform_indices = @transform_1, window_bounds = array<i64: 8, 16>}, {pipeline_mode = #tpu.pipeline_mode<synchronous>, transform_indices = @transform_2, window_bounds = array<i64: 16, 32>}, {pipeline_mode = #tpu.pipeline_mode<synchronous>, transform_indices = @transform_3, window_bounds = array<i64: 1, 32>}, {pipeline_mode = #tpu.pipeline_mode<synchronous>, transform_indices = @transform_4, window_bounds = array<i64: 32, 32>}, {pipeline_mode = #tpu.pipeline_mode<synchronous>, transform_indices = @transform_5, window_bounds = array<i64: 1, 32>}, {pipeline_mode = #tpu.pipeline_mode<synchronous>, transform_indices = @transform_6, window_bounds = array<i64: 1, 32>}, {transform_indices = @transform_7, window_bounds = array<i64: 1, 1>}, {transform_indices = @transform_8, window_bounds = array<i64: 8, 1>}]} {
    %c0 = arith.constant 0 : index
    %c0_0 = arith.constant 0 : index
    %0 = vector.load %arg1[%c0, %c0_0] : memref<8x16xf32, #tpu.memory_space<vmem>>, vector<8x16xf32>
    %c0_1 = arith.constant 0 : index
    %c0_2 = arith.constant 0 : index
    %1 = vector.load %arg2[%c0_1, %c0_2] : memref<8x16xf32, #tpu.memory_space<vmem>>, vector<8x16xf32>
    %2 = tpu.concatenate %0, %1 in 0 : vector<8x16xf32>, vector<8x16xf32> -> vector<16x16xf32>
    %c0_3 = arith.constant 0 : index
    %c0_4 = arith.constant 0 : index
    %3 = vector.load %arg3[%c0_3, %c0_4] : memref<16x32xf32, #tpu.memory_space<vmem>>, vector<16x32xf32>
    %cst = arith.constant dense<0.000000e+00> : vector<16x32xf32>
    %4 = tpu.matmul %2, %3, %cst {dimension_numbers = #tpu.dot_dimension_numbers<[1], [0], [0], [1], [0, 0, 1, 1], [], []>} : vector<16x16xf32>, vector<16x32xf32>, vector<16x32xf32> -> vector<16x32xf32>
    %c0_5 = arith.constant 0 : index
    %c0_6 = arith.constant 0 : index
    %5 = vector.load %arg4[%c0_5, %c0_6] : memref<1x32xf32, #tpu.memory_space<vmem>>, vector<1x32xf32>
    %6 = vector.broadcast %5 : vector<1x32xf32> to vector<16x32xf32>
    %7 = arith.addf %4, %6 : vector<16x32xf32>
    %cst_7 = arith.constant 0.000000e+00 : f32
    %8 = vector.broadcast %cst_7 : f32 to vector<16x32xf32>
    %9 = arith.maximumf %7, %8 : vector<16x32xf32>
    %c0_8 = arith.constant 0 : index
    %c0_9 = arith.constant 0 : index
    %10 = vector.load %arg5[%c0_8, %c0_9] : memref<32x32xf32, #tpu.memory_space<vmem>>, vector<32x32xf32>
    %cst_10 = arith.constant dense<0.000000e+00> : vector<16x32xf32>
    %11 = tpu.matmul %9, %10, %cst_10 {dimension_numbers = #tpu.dot_dimension_numbers<[1], [0], [0], [1], [0, 0, 1, 1], [], []>} : vector<16x32xf32>, vector<32x32xf32>, vector<16x32xf32> -> vector<16x32xf32>
    %c0_11 = arith.constant 0 : index
    %c0_12 = arith.constant 0 : index
    %12 = vector.load %arg6[%c0_11, %c0_12] : memref<1x32xf32, #tpu.memory_space<vmem>>, vector<1x32xf32>
    %13 = vector.broadcast %12 : vector<1x32xf32> to vector<16x32xf32>
    %14 = arith.addf %11, %13 : vector<16x32xf32>
    %cst_13 = arith.constant 0.000000e+00 : f32
    %15 = vector.broadcast %cst_13 : f32 to vector<16x32xf32>
    %16 = arith.maximumf %14, %15 : vector<16x32xf32>
    %17 = vector.extract_strided_slice %16 {offsets = [0, 0], sizes = [8, 32], strides = [1, 1]} : vector<16x32xf32> to vector<8x32xf32>
    %18 = vector.extract_strided_slice %16 {offsets = [8, 0], sizes = [8, 32], strides = [1, 1]} : vector<16x32xf32> to vector<8x32xf32>
    %19 = arith.subf %17, %18 : vector<8x32xf32>
    %20 = math.absf %19 : vector<8x32xf32>
    %c0_14 = arith.constant 0 : index
    %c0_15 = arith.constant 0 : index
    %21 = vector.load %arg7[%c0_14, %c0_15] : memref<1x32xf32, #tpu.memory_space<vmem>>, vector<1x32xf32>
    %22 = vector.broadcast %21 : vector<1x32xf32> to vector<8x32xf32>
    %23 = arith.mulf %20, %22 : vector<8x32xf32>
    %cst_16 = arith.constant dense<0.000000e+00> : vector<8xf32>
    %24 = vector.multi_reduction <add>, %23, %cst_16 [1] : vector<8x32xf32> to vector<8xf32>
    %25 = vector.shape_cast %24 : vector<8xf32> to vector<8x1xf32>
    %c0_17 = arith.constant 0 : index
    %c0_18 = arith.constant 0 : index
    %26 = memref.load %arg8[%c0_17, %c0_18] : memref<1x1xf32, #tpu.memory_space<smem>>
    %27 = vector.broadcast %26 : f32 to vector<8x1xf32>
    %28 = arith.addf %25, %27 : vector<8x1xf32>
    %c0_19 = arith.constant 0 : index
    %c0_20 = arith.constant 0 : index
    %29 = vector.load %arg9[%c0_19, %c0_20] : memref<8x1xf32, #tpu.memory_space<vmem>>, vector<8x1xf32>
    tpu.vector_store %arg9[%c0_19, %c0_20], %28 {strides = array<i32>} : memref<8x1xf32, #tpu.memory_space<vmem>>, vector<8x1xf32>,
    return
  }
  func.func @transform_0(%arg0: i32) -> (i32, i32) {
    %c0_i32 = arith.constant 0 : i32
    %c0_i32_0 = arith.constant 0 : i32
    return %arg0, %c0_i32 : i32, i32
  }
  func.func @transform_1(%arg0: i32) -> (i32, i32) {
    %c0_i32 = arith.constant 0 : i32
    %c0_i32_0 = arith.constant 0 : i32
    return %arg0, %c0_i32 : i32, i32
  }
  func.func @transform_2(%arg0: i32) -> (i32, i32) {
    %c0_i32 = arith.constant 0 : i32
    %c0_i32_0 = arith.constant 0 : i32
    %c0_i32_1 = arith.constant 0 : i32
    return %c0_i32, %c0_i32_0 : i32, i32
  }
  func.func @transform_3(%arg0: i32) -> (i32, i32) {
    %c0_i32 = arith.constant 0 : i32
    %c0_i32_0 = arith.constant 0 : i32
    %c0_i32_1 = arith.constant 0 : i32
    return %c0_i32, %c0_i32_0 : i32, i32
  }
  func.func @transform_4(%arg0: i32) -> (i32, i32) {
    %c0_i32 = arith.constant 0 : i32
    %c0_i32_0 = arith.constant 0 : i32
    %c0_i32_1 = arith.constant 0 : i32
    return %c0_i32, %c0_i32_0 : i32, i32
  }
  func.func @transform_5(%arg0: i32) -> (i32, i32) {
    %c0_i32 = arith.constant 0 : i32
    %c0_i32_0 = arith.constant 0 : i32
    %c0_i32_1 = arith.constant 0 : i32
    return %c0_i32, %c0_i32_0 : i32, i32
  }
  func.func @transform_6(%arg0: i32) -> (i32, i32) {
    %c0_i32 = arith.constant 0 : i32
    %c0_i32_0 = arith.constant 0 : i32
    %c0_i32_1 = arith.constant 0 : i32
    return %c0_i32, %c0_i32_0 : i32, i32
  }
  func.func @transform_7(%arg0: i32) -> (i32, i32) {
    %c0_i32 = arith.constant 0 : i32
    %c0_i32_0 = arith.constant 0 : i32
    %c0_i32_1 = arith.constant 0 : i32
    return %c0_i32, %c0_i32_0 : i32, i32
  }
  func.func @transform_8(%arg0: i32) -> (i32, i32) {
    %c0_i32 = arith.constant 0 : i32
    %c0_i32_0 = arith.constant 0 : i32
    return %arg0, %c0_i32 : i32, i32
  }
}

</mosaic_0001>

<llo_original>
// kernel: tpu_custom_call.1
$region0: #{tpu_custom_call.1}
  #allocation0 [shape = 'u32[]', space=smem, size = 0x4, offset = 0x4, fixed_abs, tag = 'smem constant byte address 0x4 - core index']
  #allocation1 [shape = 'u32[72,128]{1,0:T(1,128)}', space=vmem, size = 0x9000, scoped, tag = 'internal scratch']
  #allocation2 [shape = 'f32[1,1]{1,0:T(1,128)S(6)}', space=smem, size = 0x200, scoped, tag = 'scoped memory for tpu_custom_call.1']
  %s0 = inlined_call_operand.hbm [shape: f32[16,16], index: 0, kind: input, shape index: {}]
  %s1 = inlined_call_operand.hbm [shape: f32[16,16], index: 1, kind: input, shape index: {}]
  %s2 = inlined_call_operand.hbm [shape: f32[16,32], index: 2, kind: input, shape index: {}]
  %s3 = inlined_call_operand.vmem [shape: f32[1,32], index: 3, kind: input, shape index: {}]
  %s4 = inlined_call_operand.hbm [shape: f32[32,32], index: 4, kind: input, shape index: {}]
  %s5 = inlined_call_operand.vmem [shape: f32[1,32], index: 5, kind: input, shape index: {}]
  %s6 = inlined_call_operand.vmem [shape: f32[1,32], index: 6, kind: input, shape index: {}]
  %s7 = inlined_call_operand.<no memory space> [shape: f32[1,1], index: 7, kind: input, shape index: {}]
  %s8 = inlined_call_operand.vmem [shape: f32[16,1], index: 8, kind: output, shape index: {}]
  %s9 = sld [smem:[#allocation0]]
  $region81: #{tpu_custom_call.1} parent=0
    _
  %s11 = ssub.s32 1, %s9
  %s12 = scalar_select 0, %s11, %s9
  %13 = sst [smem:[#allocation2]] %s7
  $region1: #{tpu_custom_call.1} parent=0
    #allocation3 [shape = 'u8[8192]{0}', space=vmem, size = 0x2000, scoped, tag = 'input window, operand 0']
    #allocation4 [shape = 's32[2]{0}', space=sflag, size = 0x8, scoped, tag = 'scoped memory for tpu_custom_call.1']
    #allocation5 [shape = 'u8[8192]{0}', space=vmem, size = 0x2000, scoped, tag = 'input window, operand 1']
    #allocation6 [shape = 's32[2]{0}', space=sflag, size = 0x8, scoped, tag = 'scoped memory for tpu_custom_call.1']
    #allocation7 [shape = 'u8[8192]{0}', space=vmem, size = 0x2000, scoped, tag = 'input window, operand 2, single buffered']
    #allocation8 [shape = 'u8[16384]{0}', space=vmem, size = 0x4000, scoped, tag = 'input window, operand 4, single buffered']
    #allocation9 [shape = 's32[1]{0}', space=sflag, size = 0x4, scoped, tag = 'scoped memory for tpu_custom_call.1']
    %14 = vsyncpa [#allocation4], 0
    %s15 = scalar_lea.sflag [#allocation4], 1
    %16 = vsyncpa %s15, 0
    %17 = vsyncpa [#allocation6], 0
    %s18 = scalar_lea.sflag [#allocation6], 1
    %19 = vsyncpa %s18, 0
    %20 = vsyncpa [#allocation9], 0
    loop: start=0, step=1, limit=4
    $region2: #{tpu_custom_call.1} parent=1 // loop_pre_header
      _
    $region3: #{tpu_custom_call.1} parent=1 // loop_header
      %s22 = sphi 0, %s26
      %p23 = scmp.ge.s32.totalorder %s22, 4
      %s32 = sphi 0, %s34
      %s35 = sphi 0, %s32
      %s36 = sphi 0, %s35
      %s52 = sphi 0, %s36
      %s58 = sphi 0, %s60
      %s61 = sphi 0, %s58
      %s62 = sphi 0, %s61
      %s78 = sphi 0, %s62
      %s82 = sphi 0, %s82
      %s84 = sphi 0, %s82
      %s85 = sphi 0, %s84
      %s99 = sphi 0, %s85
      %s103 = sphi 0, %s103
      %s105 = sphi 0, %s103
      %s106 = sphi 0, %s105
      %s120 = sphi 0, %s106
      %s124 = sphi 0, %s124
      %s126 = sphi 0, %s124
      %s127 = sphi 0, %s126
      %s141 = sphi 0, %s127
      %s145 = sphi 0, %s145
      %s147 = sphi 0, %s145
      %s148 = sphi 0, %s147
      %s162 = sphi 0, %s148
      %s166 = sphi 0, %s166
      %s168 = sphi 0, %s166
      %s169 = sphi 0, %s168
      %s183 = sphi 0, %s169
      %s187 = sphi 0, %s187
      %s189 = sphi 0, %s187
      %s190 = sphi 0, %s189
      %s204 = sphi 0, %s190
      %s210 = sphi 0, %s212
      %s213 = sphi 0, %s210
      %s214 = sphi 0, %s213
      %s230 = sphi 0, %s214
    $region4: #{tpu_custom_call.1} parent=1 // loop_header_branch
      %25 = sbr.rel (%p23) target = $region8
    $region5: #{tpu_custom_call.1} parent=1 // loop_body
      %s27 = ssub.s32 %s22, 1
      %s28 = ssub.s32 %s22, 2
      %s29 = sadd.s32 %s22, 1
      %s30 = ssub.s32 %s22, %s29
      %p31 = scmp.eq.s32.totalorder %s30, 0
      %s33 = sadd.s32 %s32, 1
      %s34 = scalar_select %p31, %s32, %s33
      %p37 = pneg %p31
      %p38 = scmp.eq.s32.totalorder %s22, 1
      %p39 = por %p37, %p38
      %p40 = scmp.ne.s32.totalorder %s32, %s35
      %p41 = scmp.eq.s32.totalorder %s22, 0
      %p42 = por %p40, %p41
      %p43 = scmp.ne.s32.totalorder %s32, %s35
      %p44 = scmp.eq.s32.totalorder %s27, 1
      %p45 = por %p43, %p44
      %p46 = scmp.ne.s32.totalorder %s35, %s36
      %p47 = scmp.eq.s32.totalorder %s27, 0
      %p48 = por %p46, %p47
      %p49 = scmp.ne.s32.totalorder %s35, %s36
      %p50 = scmp.eq.s32.totalorder %s28, 1
      %p51 = por %p49, %p50
      %p53 = scmp.ne.s32.totalorder %s36, %s52
      %p54 = scmp.eq.s32.totalorder %s28, 0
      %p55 = por %p53, %p54
      %s56 = ssub.s32 %s22, %s29
      %p57 = scmp.eq.s32.totalorder %s56, 0
      %s59 = sadd.s32 %s58, 1
      %s60 = scalar_select %p57, %s58, %s59
      %p63 = pneg %p57
      %p64 = scmp.eq.s32.totalorder %s22, 1
      %p65 = por %p63, %p64
      %p66 = scmp.ne.s32.totalorder %s58, %s61
      %p67 = scmp.eq.s32.totalorder %s22, 0
      %p68 = por %p66, %p67
      %p69 = scmp.ne.s32.totalorder %s58, %s61
      %p70 = scmp.eq.s32.totalorder %s27, 1
      %p71 = por %p69, %p70
      %p72 = scmp.ne.s32.totalorder %s61, %s62
      %p73 = scmp.eq.s32.totalorder %s27, 0
      %p74 = por %p72, %p73
      %p75 = scmp.ne.s32.totalorder %s61, %s62
      %p76 = scmp.eq.s32.totalorder %s28, 1
      %p77 = por %p75, %p76
      %p79 = scmp.ne.s32.totalorder %s62, %s78
      %p80 = scmp.eq.s32.totalorder %s28, 0
      %p81 = por %p79, %p80
      %s83 = sadd.s32 %s82, 1
      %p86 = scmp.eq.s32.totalorder %s22, 1
      %p87 = scmp.ne.s32.totalorder %s82, %s84
      %p88 = scmp.eq.s32.totalorder %s22, 0
      %p89 = por %p87, %p88
      %p90 = scmp.ne.s32.totalorder %s82, %s84
      %p91 = scmp.eq.s32.totalorder %s27, 1
      %p92 = por %p90, %p91
      %p93 = scmp.ne.s32.totalorder %s84, %s85
      %p94 = scmp.eq.s32.totalorder %s27, 0
      %p95 = por %p93, %p94
      %p96 = scmp.ne.s32.totalorder %s84, %s85
      %p97 = scmp.eq.s32.totalorder %s28, 1
      %p98 = por %p96, %p97
      %p100 = scmp.ne.s32.totalorder %s85, %s99
      %p101 = scmp.eq.s32.totalorder %s28, 0
      %p102 = por %p100, %p101
      %s104 = sadd.s32 %s103, 1
      %p107 = scmp.eq.s32.totalorder %s22, 1
      %p108 = scmp.ne.s32.totalorder %s103, %s105
      %p109 = scmp.eq.s32.totalorder %s22, 0
      %p110 = por %p108, %p109
      %p111 = scmp.ne.s32.totalorder %s103, %s105
      %p112 = scmp.eq.s32.totalorder %s27, 1
      %p113 = por %p111, %p112
      %p114 = scmp.ne.s32.totalorder %s105, %s106
      %p115 = scmp.eq.s32.totalorder %s27, 0
      %p116 = por %p114, %p115
      %p117 = scmp.ne.s32.totalorder %s105, %s106
      %p118 = scmp.eq.s32.totalorder %s28, 1
      %p119 = por %p117, %p118
      %p121 = scmp.ne.s32.totalorder %s106, %s120
      %p122 = scmp.eq.s32.totalorder %s28, 0
      %p123 = por %p121, %p122
      %s125 = sadd.s32 %s124, 1
      %p128 = scmp.eq.s32.totalorder %s22, 1
      %p129 = scmp.ne.s32.totalorder %s124, %s126
      %p130 = scmp.eq.s32.totalorder %s22, 0
      %p131 = por %p129, %p130
      %p132 = scmp.ne.s32.totalorder %s124, %s126
      %p133 = scmp.eq.s32.totalorder %s27, 1
      %p134 = por %p132, %p133
      %p135 = scmp.ne.s32.totalorder %s126, %s127
      %p136 = scmp.eq.s32.totalorder %s27, 0
      %p137 = por %p135, %p136
      %p138 = scmp.ne.s32.totalorder %s126, %s127
      %p139 = scmp.eq.s32.totalorder %s28, 1
      %p140 = por %p138, %p139
      %p142 = scmp.ne.s32.totalorder %s127, %s141
      %p143 = scmp.eq.s32.totalorder %s28, 0
      %p144 = por %p142, %p143
      %s146 = sadd.s32 %s145, 1
      %p149 = scmp.eq.s32.totalorder %s22, 1
      %p150 = scmp.ne.s32.totalorder %s145, %s147
      %p151 = scmp.eq.s32.totalorder %s22, 0
      %p152 = por %p150, %p151
      %p153 = scmp.ne.s32.totalorder %s145, %s147
      %p154 = scmp.eq.s32.totalorder %s27, 1
      %p155 = por %p153, %p154
      %p156 = scmp.ne.s32.totalorder %s147, %s148
      %p157 = scmp.eq.s32.totalorder %s27, 0
      %p158 = por %p156, %p157
      %p159 = scmp.ne.s32.totalorder %s147, %s148
      %p160 = scmp.eq.s32.totalorder %s28, 1
      %p161 = por %p159, %p160
      %p163 = scmp.ne.s32.totalorder %s148, %s162
      %p164 = scmp.eq.s32.totalorder %s28, 0
      %p165 = por %p163, %p164
      %s167 = sadd.s32 %s166, 1
      %p170 = scmp.eq.s32.totalorder %s22, 1
      %p171 = scmp.ne.s32.totalorder %s166, %s168
      %p172 = scmp.eq.s32.totalorder %s22, 0
      %p173 = por %p171, %p172
      %p174 = scmp.ne.s32.totalorder %s166, %s168
      %p175 = scmp.eq.s32.totalorder %s27, 1
      %p176 = por %p174, %p175
      %p177 = scmp.ne.s32.totalorder %s168, %s169
      %p178 = scmp.eq.s32.totalorder %s27, 0
      %p179 = por %p177, %p178
      %p180 = scmp.ne.s32.totalorder %s168, %s169
      %p181 = scmp.eq.s32.totalorder %s28, 1
      %p182 = por %p180, %p181
      %p184 = scmp.ne.s32.totalorder %s169, %s183
      %p185 = scmp.eq.s32.totalorder %s28, 0
      %p186 = por %p184, %p185
      %s188 = sadd.s32 %s187, 1
      %p191 = scmp.eq.s32.totalorder %s22, 1
      %p192 = scmp.ne.s32.totalorder %s187, %s189
      %p193 = scmp.eq.s32.totalorder %s22, 0
      %p194 = por %p192, %p193
      %p195 = scmp.ne.s32.totalorder %s187, %s189
      %p196 = scmp.eq.s32.totalorder %s27, 1
      %p197 = por %p195, %p196
      %p198 = scmp.ne.s32.totalorder %s189, %s190
      %p199 = scmp.eq.s32.totalorder %s27, 0
      %p200 = por %p198, %p199
      %p201 = scmp.ne.s32.totalorder %s189, %s190
      %p202 = scmp.eq.s32.totalorder %s28, 1
      %p203 = por %p201, %p202
      %p205 = scmp.ne.s32.totalorder %s190, %s204
      %p206 = scmp.eq.s32.totalorder %s28, 0
      %p207 = por %p205, %p206
      %s208 = ssub.s32 %s22, %s29
      %p209 = scmp.eq.s32.totalorder %s208, 0
      %s211 = sadd.s32 %s210, 1
      %s212 = scalar_select %p209, %s210, %s211
      %p215 = pneg %p209
      %p216 = scmp.eq.s32.totalorder %s22, 1
      %p217 = por %p215, %p216
      %p218 = scmp.ne.s32.totalorder %s210, %s213
      %p219 = scmp.eq.s32.totalorder %s22, 0
      %p220 = por %p218, %p219
      %p221 = scmp.ne.s32.totalorder %s210, %s213
      %p222 = scmp.eq.s32.totalorder %s27, 1
      %p223 = por %p221, %p222
      %p224 = scmp.ne.s32.totalorder %s213, %s214
      %p225 = scmp.eq.s32.totalorder %s27, 0
      %p226 = por %p224, %p225
      %p227 = scmp.ne.s32.totalorder %s213, %s214
      %p228 = scmp.eq.s32.totalorder %s28, 1
      %p229 = por %p227, %p228
      %p231 = scmp.ne.s32.totalorder %s214, %s230
      %p232 = scmp.eq.s32.totalorder %s28, 0
      %p233 = por %p231, %p232
      %p234 = scmp.le.s32.totalorder 1, %s22
      %p235 = scmp.lt.s32.totalorder %s22, 3
      %p236 = pnand %p234, %p235
      %p237 = pneg %p236
      // Predicated region
      $region9: #{tpu_custom_call.1} parent=5 // pred_check
        _
      $region10: #{tpu_custom_call.1} parent=5 // pred_check_branch
        %239 = sbr.rel (%p236) target = $region12
      $region11: #{tpu_custom_call.1} parent=5 // pred_region
        %s240 = ssub.s32 %s22, 1
        // Predicated region
        $region13: #{tpu_custom_call.1} parent=11 // pred_check
          %p241 = pneg %p95
        $region14: #{tpu_custom_call.1} parent=11 // pred_check_branch
          %243 = sbr.rel (%p241) target = $region16
        $region15: #{tpu_custom_call.1} parent=11 // pred_region
          %245 = vsyncadd [#allocation6], 0
          %s246 = sshll.u32 %s2, 4
          %s247 = int_to_ptr.hbm [resolvable:$true] %s246
          %s248 = sshll.u32 [#allocation7], 4
          %s249 = int_to_ptr.vmem [resolvable:$true] %s248
          %254 = dma.hbm_to_vmem [thread:$0]  %s247, 256, %s249, [#allocation6], 128, 128, 8
        $region16: #{tpu_custom_call.1} parent=11 // pred_fallthru
          _
        // Predicated region
        $region17: #{tpu_custom_call.1} parent=11 // pred_check
          %p255 = pneg %p116
        $region18: #{tpu_custom_call.1} parent=11 // pred_check_branch
          %257 = sbr.rel (%p255) target = $region20
        $region19: #{tpu_custom_call.1} parent=11 // pred_region
          _
        $region20: #{tpu_custom_call.1} parent=11 // pred_fallthru
          _
        // Predicated region
        $region21: #{tpu_custom_call.1} parent=11 // pred_check
          %p258 = pneg %p137
        $region22: #{tpu_custom_call.1} parent=11 // pred_check_branch
          %260 = sbr.rel (%p258) target = $region24
        $region23: #{tpu_custom_call.1} parent=11 // pred_region
          %262 = vsyncadd [#allocation9], 0
          %s263 = sshll.u32 %s4, 4
          %s264 = int_to_ptr.hbm [resolvable:$true] %s263
          %s265 = sshll.u32 [#allocation8], 4
          %s266 = int_to_ptr.vmem [resolvable:$true] %s265
          %271 = dma.hbm_to_vmem [thread:$0]  %s264, 512, %s266, [#allocation9], 128, 128, 8
        $region24: #{tpu_custom_call.1} parent=11 // pred_fallthru
          _
        // Predicated region
        $region25: #{tpu_custom_call.1} parent=11 // pred_check
          %p272 = pneg %p158
        $region26: #{tpu_custom_call.1} parent=11 // pred_check_branch
          %274 = sbr.rel (%p272) target = $region28
        $region27: #{tpu_custom_call.1} parent=11 // pred_region
          _
        $region28: #{tpu_custom_call.1} parent=11 // pred_fallthru
          _
        // Predicated region
        $region29: #{tpu_custom_call.1} parent=11 // pred_check
          %p275 = pneg %p179
        $region30: #{tpu_custom_call.1} parent=11 // pred_check_branch
          %277 = sbr.rel (%p275) target = $region32
        $region31: #{tpu_custom_call.1} parent=11 // pred_region
          _
        $region32: #{tpu_custom_call.1} parent=11 // pred_fallthru
          _
        // Predicated region
        $region33: #{tpu_custom_call.1} parent=11 // pred_check
          %p278 = pneg %p200
        $region34: #{tpu_custom_call.1} parent=11 // pred_check_branch
          %280 = sbr.rel (%p278) target = $region36
        $region35: #{tpu_custom_call.1} parent=11 // pred_region
          _
        $region36: #{tpu_custom_call.1} parent=11 // pred_fallthru
          _
      $region12: #{tpu_custom_call.1} parent=5 // pred_fallthru
        _
      %p281 = scmp.lt.s32.totalorder %s22, 2
      // Predicated region
      $region37: #{tpu_custom_call.1} parent=5 // pred_check
        %p282 = pneg %p281
      $region38: #{tpu_custom_call.1} parent=5 // pred_check_branch
        %284 = sbr.rel (%p282) target = $region40
      $region39: #{tpu_custom_call.1} parent=5 // pred_region
        // Predicated region
        $region41: #{tpu_custom_call.1} parent=39 // pred_check
          %p285 = pneg %p42
        $region42: #{tpu_custom_call.1} parent=39 // pred_check_branch
          %287 = sbr.rel (%p285) target = $region44
        $region43: #{tpu_custom_call.1} parent=39 // pred_region
          %s288 = sand.u32 %s32, 1
          %s289 = scalar_lea.sflag [#allocation4], %s288
          %s290 = sand.u32 %s32, 1
          %s291 = smul.addr %s290, 8
          %s292 = scalar_lea.vmem [#allocation3], %s291
          %294 = vsyncadd %s289, 0
          %s295 = smul.addr %s22, 8
          %s296 = scalar_lea.hbm %s0, %s295
          %s298 = sshll.u32 %s296, 4
          %s299 = int_to_ptr.hbm [resolvable:$true] %s298
          %s300 = sshll.u32 %s292, 4
          %s301 = int_to_ptr.vmem [resolvable:$true] %s300
          %303 = dma.hbm_to_vmem [thread:$0]  %s299, 128, %s301, %s289
        $region44: #{tpu_custom_call.1} parent=39 // pred_fallthru
          _
        // Predicated region
        $region45: #{tpu_custom_call.1} parent=39 // pred_check
          %p304 = pneg %p68
        $region46: #{tpu_custom_call.1} parent=39 // pred_check_branch
          %306 = sbr.rel (%p304) target = $region48
        $region47: #{tpu_custom_call.1} parent=39 // pred_region
          %s307 = sand.u32 %s22, 1
          %s308 = scalar_lea.sflag [#allocation6], %s307
          %s309 = sand.u32 %s58, 1
          %s310 = smul.addr %s309, 8
          %s311 = scalar_lea.vmem [#allocation5], %s310
          %313 = vsyncadd %s308, 0
          %s314 = smul.addr %s22, 8
          %s315 = scalar_lea.hbm %s1, %s314
          %s317 = sshll.u32 %s315, 4
          %s318 = int_to_ptr.hbm [resolvable:$true] %s317
          %s319 = sshll.u32 %s311, 4
          %s320 = int_to_ptr.vmem [resolvable:$true] %s319
          %322 = dma.hbm_to_vmem [thread:$0]  %s318, 128, %s320, %s308
        $region48: #{tpu_custom_call.1} parent=39 // pred_fallthru
          _
      $region40: #{tpu_custom_call.1} parent=5 // pred_fallthru
        _
      %p323 = scmp.le.s32.totalorder 1, %s22
      %p324 = scmp.lt.s32.totalorder %s22, 3
      %p325 = pnand %p323, %p324
      %p326 = pneg %p325
      // Predicated region
      $region49: #{tpu_custom_call.1} parent=5 // pred_check
        _
      $region50: #{tpu_custom_call.1} parent=5 // pred_check_branch
        %328 = sbr.rel (%p325) target = $region52
      $region51: #{tpu_custom_call.1} parent=5 // pred_region
        %s329 = ssub.s32 %s22, 1
        %s330 = sand.u32 %s35, 1
        %s331 = scalar_lea.sflag [#allocation4], %s330
        %s332 = sand.u32 %s35, 1
        %s333 = smul.addr %s332, 8
        %s334 = scalar_lea.vmem [#allocation3], %s333
        // Predicated region
        $region53: #{tpu_custom_call.1} parent=51 // pred_check
          %p335 = pneg %p48
        $region54: #{tpu_custom_call.1} parent=51 // pred_check_branch
          %337 = sbr.rel (%p335) target = $region56
        $region55: #{tpu_custom_call.1} parent=51 // pred_region
          %339 = dma.done %s331, 128
        $region56: #{tpu_custom_call.1} parent=51 // pred_fallthru
          _
        %s340 = sand.u32 %s27, 1
        %s341 = scalar_lea.sflag [#allocation6], %s340
        %s342 = sand.u32 %s61, 1
        %s343 = smul.addr %s342, 8
        %s344 = scalar_lea.vmem [#allocation5], %s343
        // Predicated region
        $region57: #{tpu_custom_call.1} parent=51 // pred_check
          %p345 = pneg %p74
        $region58: #{tpu_custom_call.1} parent=51 // pred_check_branch
          %347 = sbr.rel (%p345) target = $region60
        $region59: #{tpu_custom_call.1} parent=51 // pred_region
          %349 = dma.done %s341, 128
        $region60: #{tpu_custom_call.1} parent=51 // pred_fallthru
          _
        // Predicated region
        $region61: #{tpu_custom_call.1} parent=51 // pred_check
          %p350 = pneg %p95
        $region62: #{tpu_custom_call.1} parent=51 // pred_check_branch
          %352 = sbr.rel (%p350) target = $region64
        $region63: #{tpu_custom_call.1} parent=51 // pred_region
          %354 = dma.done [#allocation6], 256
        $region64: #{tpu_custom_call.1} parent=51 // pred_fallthru
          _
        // Predicated region
        $region65: #{tpu_custom_call.1} parent=51 // pred_check
          %p355 = pneg %p137
        $region66: #{tpu_custom_call.1} parent=51 // pred_check_branch
          %357 = sbr.rel (%p355) target = $region68
        $region67: #{tpu_custom_call.1} parent=51 // pred_region
          %359 = dma.done [#allocation9], 512
        $region68: #{tpu_custom_call.1} parent=51 // pred_fallthru
          _
        %s360 = sand.u32 %s35, 1
        %s361 = scalar_lea.sflag [#allocation4], %s360
        %s362 = sand.u32 %s35, 1
        %s363 = smul.addr %s362, 8
        %s364 = scalar_lea.vmem [#allocation3], %s363
        %p365 = pneg %p48
        %p366 = pneg %p45
        %s367 = sand.u32 %s27, 1
        %s368 = scalar_lea.sflag [#allocation6], %s367
        %s369 = sand.u32 %s61, 1
        %s370 = smul.addr %s369, 8
        %s371 = scalar_lea.vmem [#allocation5], %s370
        %p372 = pneg %p74
        %p373 = pneg %p71
        %p374 = pneg %p95
        %p375 = pneg %p92
        %p376 = pneg %p116
        %p377 = pneg %p113
        %p378 = pneg %p137
        %p379 = pneg %p134
        %p380 = pneg %p158
        %p381 = pneg %p155
        %p382 = pneg %p179
        %p383 = pneg %p176
        %p384 = pneg %p200
        %p385 = pneg %p197
        %p386 = pneg %p226
        %p387 = pneg %p223
        %p388 = scmp.lt.s32.totalorder %s27, 1
        %s389 = scalar_select %p388, %s27, 1
        %s390 = smul.addr %s389, 8
        %s391 = scalar_lea.vmem %s8, %s390
        %p392 = scmp.lt.s32.totalorder %s27, 1
        %s393 = scalar_select %p392, %s27, 1
        %s394 = smul.addr %s393, 8
        %s395 = scalar_lea.vmem %s8, %s394
        %v396 = vld [vmem:[%s334] sm:$0xff]
        %v397 = vld [vmem:[%s344] sm:$0xff]
        %v398 = vld [vmem:[#allocation7] sm:$0xff]
        %v399 = vld [vmem:[#allocation7 + $0x8] sm:$0xff]
        %v400 = vld [vmem:[%s3] sm:$0x1]
        %v402 = vperm.slane %v400, 0
        %vm404 = vcmask 130048
        %v406 = vsel %vm404, %v396, 0
        %v409 = vsel %vm404, %v397, 0
        %411 = vmatpush.msra.mxu0 0.0
        %412 = vmatpush.msra.mxu0 0.0
        %413 = vmatpush.msra.mxu0 0.0
        %414 = vmatpush.msra.mxu0 0.0
        %415 = vmatpush.msra.mxu0 0.0
        %416 = vmatpush.msra.mxu0 0.0
        %417 = vmatpush.msra.mxu0 0.0
        %418 = vmatpush.msra.mxu0 0.0
        %419 = vmatpush.msra.mxu0 0.0
        %420 = vmatpush.msra.mxu0 0.0
        %421 = vmatpush.msra.mxu0 0.0
        %422 = vmatpush.msra.mxu0 0.0
        %423 = vmatpush.msra.mxu0 0.0
        %424 = vmatpush.msra.mxu0 0.0
        %425 = vmatpush.msra.mxu0 %v399
        %426 = vmatpush.msra.mxu0 %v398
        %427 = vmatmul.f32.gmra.mxu0 %v406
        %v428 = vpop.f32.mrf.mxu0
        %v429 = vadd.f32 %v402, %v428
        %430 = vmatmul.f32.gmra.mxu0 %v409
        %v431 = vpop.f32.mrf.mxu0
        %v432 = vadd.f32 %v402, %v431
        %433 = vdwg.mxu0
        %v434 = vmax.f32 %v429, 0.0
        %v435 = vmax.f32 %v432, 0.0
        %v436 = vld [vmem:[#allocation8] sm:$0xff]
        %v437 = vld [vmem:[#allocation8 + $0x8] sm:$0xff]
        %v438 = vld [vmem:[#allocation8 + $0x10] sm:$0xff]
        %v439 = vld [vmem:[#allocation8 + $0x18] sm:$0xff]
        %v440 = vld [vmem:[%s5] sm:$0x1]
        %v442 = vperm.slane %v440, 0
        %vm444 = vcmask 261120
        %v446 = vsel %vm444, %v434, 0
        %v449 = vsel %vm444, %v435, 0
        %451 = vmatpush.msra.mxu0 0.0
        %452 = vmatpush.msra.mxu0 0.0
        %453 = vmatpush.msra.mxu0 0.0
        %454 = vmatpush.msra.mxu0 0.0
        %455 = vmatpush.msra.mxu0 0.0
        %456 = vmatpush.msra.mxu0 0.0
        %457 = vmatpush.msra.mxu0 0.0
        %458 = vmatpush.msra.mxu0 0.0
        %459 = vmatpush.msra.mxu0 0.0
        %460 = vmatpush.msra.mxu0 0.0
        %461 = vmatpush.msra.mxu0 0.0
        %462 = vmatpush.msra.mxu0 0.0
        %463 = vmatpush.msra.mxu0 %v439
        %464 = vmatpush.msra.mxu0 %v438
        %465 = vmatpush.msra.mxu0 %v437
        %466 = vmatpush.msra.mxu0 %v436
        %467 = vmatmul.f32.gmra.mxu0 %v446
        %v468 = vpop.f32.mrf.mxu0
        %v469 = vadd.f32 %v442, %v468
        %470 = vmatmul.f32.gmra.mxu0 %v449
        %v471 = vpop.f32.mrf.mxu0
        %v472 = vadd.f32 %v442, %v471
        %473 = vdwg.mxu0
        %v474 = vmax.f32 %v469, 0.0
        %v475 = vmax.f32 %v472, 0.0
        %v476 = vsub.f32 %v474, %v475
        %v477 = vand.u32 2147483647, %v476
        %v478 = vld [vmem:[%s6] sm:$0x1]
        %v480 = vperm.slane %v478, 0
        %v482 = vmul.f32 %v477, %v480
        %v483 = vsel %vm444, %v482, 0.0
        %484 = vadd.xlane.f32.xlu0 %v483
        %v485 = vpop.xlane.xlu0 %484
        %s486 = sld [smem:[#allocation2]]
        %v487 = vstv %s486
        %v488 = vadd.f32 %v485, %v487
        %vm489 = vcmask 7168
        %490 = vst.msk [vmem:[%s395] sm:$0xff] %vm489, %v488
        %p491 = scmp.lt.s32.totalorder %s27, 1
        %s492 = scalar_select %p491, %s27, 1
        %s493 = smul.addr %s492, 8
        %s494 = scalar_lea.vmem %s8, %s493
        // Predicated region
        $region69: #{tpu_custom_call.1} parent=51 // pred_check
          %p495 = pneg %p223
        $region70: #{tpu_custom_call.1} parent=51 // pred_check_branch
          %497 = sbr.rel (%p495) target = $region72
        $region71: #{tpu_custom_call.1} parent=51 // pred_region
          _
        $region72: #{tpu_custom_call.1} parent=51 // pred_fallthru
          _
      $region52: #{tpu_custom_call.1} parent=5 // pred_fallthru
        _
      %p498 = scmp.le.s32.totalorder 2, %s22
      // Predicated region
      $region73: #{tpu_custom_call.1} parent=5 // pred_check
        %p499 = pneg %p498
      $region74: #{tpu_custom_call.1} parent=5 // pred_check_branch
        %501 = sbr.rel (%p499) target = $region76
      $region75: #{tpu_custom_call.1} parent=5 // pred_region
        %s502 = ssub.s32 %s22, 2
        // Predicated region
        $region77: #{tpu_custom_call.1} parent=75 // pred_check
          %p503 = pneg %p229
        $region78: #{tpu_custom_call.1} parent=75 // pred_check_branch
          %505 = sbr.rel (%p503) target = $region80
        $region79: #{tpu_custom_call.1} parent=75 // pred_region
          %p506 = scmp.lt.s32.totalorder %s28, 1
          %s507 = scalar_select %p506, %s28, 1
          %s508 = smul.addr %s507, 8
          %s509 = scalar_lea.vmem %s8, %s508
        $region80: #{tpu_custom_call.1} parent=75 // pred_fallthru
          _
      $region76: #{tpu_custom_call.1} parent=5 // pred_fallthru
        _
    $region6: #{tpu_custom_call.1} parent=1 // loop_footer
      %s26 = sadd.s32 1, %s22
    $region7: #{tpu_custom_call.1} parent=1 // loop_footer_branch
      %21 = sbr.rel target = $region3
    $region8: #{tpu_custom_call.1} parent=1 // loop_exit
      _
    %510 = vsyncpa [#allocation4], 1
    %s511 = scalar_lea.sflag [#allocation4], 1
    %512 = vsyncpa %s511, 1
    %513 = vsyncpa [#allocation6], 1
    %s514 = scalar_lea.sflag [#allocation6], 1
    %515 = vsyncpa %s514, 1
    %516 = vsyncpa [#allocation9], 1

</llo_original>
